<compile_context>
chip_gen: v5e
topology: v5e:2x2
jax: 0.10.0
libtpu: 0.0.40
codegen_flags: <defaults>
</compile_context>

<pallas_src>
import jax
import jax.numpy as jnp
from jax import lax
from jax.experimental import pallas as pl
from jax.experimental.pallas import tpu as pltpu

# Small, TPU-friendly synthetic shapes consistent with the module.
B = 2             # batch
L = 8             # sequence length (power of two -> row % L is a cheap mask)
E = 32            # bert.embed_size
V = 128           # bert.vocab_size (multiple of 128 -> lane-dense MLM output)
SEG = 3           # number of segment ids
SEGPAD = 8        # padded segment-table rows
AUX = SEGPAD + L  # combined (segment | position) embedding-table rows
NCLS = 2          # NextSentencePrediction classes
NPAD = 128        # lane-dense padded width for the NSP head output
NOUT = V + NPAD   # combined head output width (one MXU pass feeds both heads)
NEG = -1e30       # padding bias: exp(NEG - max) == 0 -> padded cols vanish
BL = B * L


# ---------------------------------------------------------------------------
# Fused kernel: embedding stub + both heads, one invocation, one MXU head pass
# ---------------------------------------------------------------------------
def _bert_lm_kernel(tok_ref, seg_ref, tok_emb_ref, aux_emb_ref,
                    w_ref, b_ref, mlm_ref, nsp_ref):
    # ---- Embedding stub, fused in-kernel via one-hot matmuls (MXU) --------
    tok = tok_ref[...]                                        # (BL, 1) int32
    seg = seg_ref[...]                                        # (BL, 1) int32

    # Token one-hot: (BL, V) -- V = 128 is exactly one lane group.
    cols_v = lax.broadcasted_iota(jnp.int32, (BL, V), 1)
    tok_oh = (cols_v == tok).astype(jnp.float32)

    # Combined segment|position one-hot: cols [0, SEGPAD) select the segment
    # row, cols [SEGPAD, SEGPAD+L) select the position row (row % L).  The two
    # hot lanes never collide, so one matmul sums both embeddings.
    rows_a = lax.broadcasted_iota(jnp.int32, (BL, AUX), 0)
    cols_a = lax.broadcasted_iota(jnp.int32, (BL, AUX), 1)
    pos_col = (rows_a & (L - 1)) + SEGPAD                     # L is a power of 2
    aux_oh = jnp.logical_or(cols_a == seg, cols_a == pos_col).astype(jnp.float32)

    x = jnp.dot(tok_oh, tok_emb_ref[...], preferred_element_type=jnp.float32)
    x = x + jnp.dot(aux_oh, aux_emb_ref[...], preferred_element_type=jnp.float32)

    # ---- Both heads in a single (BL, E) x (E, V+NPAD) MXU pass -------------
    logits = jnp.dot(x.astype(jnp.bfloat16), w_ref[...],
                     preferred_element_type=jnp.float32)
    logits = logits + b_ref[...]                              # (BL, NOUT) f32

    # MaskedLanguageModel: log-softmax over vocab for all BL rows.
    ml = logits[:, :V]
    m = jnp.max(ml, axis=-1, keepdims=True)
    z = ml - m
    mlm_ref[...] = z - jnp.log(jnp.sum(jnp.exp(z), axis=-1, keepdims=True))

    # NextSentencePrediction: padded columns carry a -1e30 bias so they drop
    # out of the LSE.  Extra rows ride for free in the same MXU pass; only the
    # CLS row of each batch element is written back (statically unrolled).
    nl = logits[:, V:]
    nm = jnp.max(nl, axis=-1, keepdims=True)
    nz = nl - nm
    nsp_full = nz - jnp.log(jnp.sum(jnp.exp(nz), axis=-1, keepdims=True))
    for b in range(B):
        nsp_ref[b:b + 1, :] = nsp_full[b * L:b * L + 1, :]


def bert_lm_pallas(tok_flat, seg_flat, tok_emb, aux_emb, w_comb, b_comb):
    """All inputs VMEM-resident; single kernel invocation (no grid)."""
    vmem = pl.BlockSpec(memory_space=pltpu.MemorySpace.VMEM)
    return pl.pallas_call(
        _bert_lm_kernel,
        out_shape=(
            jax.ShapeDtypeStruct((BL, V), jnp.float32),    # MLM log-probs
            jax.ShapeDtypeStruct((B, NPAD), jnp.float32),  # NSP CLS log-probs (padded)
        ),
        in_specs=[vmem] * 6,
        out_specs=(vmem, vmem),
    )(tok_flat, seg_flat, tok_emb, aux_emb, w_comb, b_comb)


# ---------------------------------------------------------------------------
# Parameter construction (deterministic, PyTorch-Linear-like uniform init)
# ---------------------------------------------------------------------------
def init_params(key):
    ks = jax.random.split(key, 7)

    def uniform(k, shape, fan_in):
        bound = 1.0 / jnp.sqrt(float(fan_in))
        return jax.random.uniform(k, shape, jnp.float32, -bound, bound)

    tok_emb = jax.random.normal(ks[0], (V, E), jnp.float32) * 0.02
    seg_emb = jax.random.normal(ks[1], (SEG, E), jnp.float32) * 0.02
    pos_emb = jax.random.normal(ks[2], (L, E), jnp.float32) * 0.02

    # Combined (segment | position) table: rows [0,SEG)=segments, [SEGPAD,)=positions.
    aux_emb = (jnp.zeros((AUX, E), jnp.float32)
               .at[:SEG].set(seg_emb)
               .at[SEGPAD:].set(pos_emb))

    # Heads: MaskedLanguageModel.fc Linear(E, V), NextSentencePrediction.fc Linear(E, 2).
    mlm_w = uniform(ks[5], (E, V), E)
    mlm_b = uniform(ks[6], (1, V), E)
    nsp_w = uniform(ks[3], (E, NCLS), E)
    nsp_b = uniform(ks[4], (1, NCLS), E)

    # Fused head weight [mlm | nsp_padded]: (E, V+NPAD) bf16, bias (1, V+NPAD) f32.
    w_comb = (jnp.zeros((E, NOUT), jnp.float32)
              .at[:, :V].set(mlm_w)
              .at[:, V:V + NCLS].set(nsp_w)).astype(jnp.bfloat16)
    b_nsp_pad = jnp.full((1, NPAD), NEG, jnp.float32).at[:, :NCLS].set(nsp_b)
    b_comb = jnp.concatenate([mlm_b, b_nsp_pad], axis=1)

    return {"tok_emb": tok_emb, "aux_emb": aux_emb,
            "w_comb": w_comb, "b_comb": b_comb}


def bert_lm_forward(params, tokens, segment_label):
    """BertLM.forward: returns (next_sentence_logprobs, mask_lm_logprobs)."""
    tok_flat = tokens.reshape(BL, 1).astype(jnp.int32)
    seg_flat = segment_label.reshape(BL, 1).astype(jnp.int32)

    mlm_all, nsp_cls = bert_lm_pallas(
        tok_flat, seg_flat,
        params["tok_emb"], params["aux_emb"],
        params["w_comb"], params["b_comb"])

    nsp = nsp_cls[:, :NCLS]           # drop lane padding (real classes only)
    mlm = mlm_all.reshape(B, L, V)    # free bitcast reshape
    return nsp, mlm


if __name__ == "__main__":
    key = jax.random.PRNGKey(0)
    kp, kt, ks = jax.random.split(key, 3)

    params = init_params(kp)
    tokens = jax.random.randint(kt, (B, L), 0, V, dtype=jnp.int32)
    segment_label = jax.random.randint(ks, (B, L), 0, SEG, dtype=jnp.int32)

    nsp, mlm = jax.jit(bert_lm_forward)(params, tokens, segment_label)
    jax.block_until_ready((nsp, mlm))

    assert nsp.shape == (B, NCLS) and mlm.shape == (B, L, V)
    # log-softmax rows should sum to ~1 in probability space
    assert jnp.allclose(jnp.exp(nsp).sum(-1), 1.0, atol=1e-4)
    assert jnp.allclose(jnp.exp(mlm).sum(-1), 1.0, atol=1e-4)

    print("KERNEL_OK")
</pallas_src>

<mosaic_0001>
module attributes {stable_mosaic.version = 11 : i64} {
  func.func @_bert_lm_kernel(%arg0: memref<16x1xi32, #tpu.memory_space<vmem>>, %arg1: memref<16x1xi32, #tpu.memory_space<vmem>>, %arg2: memref<128x32xf32, #tpu.memory_space<vmem>>, %arg3: memref<16x32xf32, #tpu.memory_space<vmem>>, %arg4: memref<32x256xbf16, #tpu.memory_space<vmem>>, %arg5: memref<1x256xf32, #tpu.memory_space<vmem>>, %arg6: memref<16x128xf32, #tpu.memory_space<vmem>>, %arg7: memref<2x128xf32, #tpu.memory_space<vmem>>) attributes {dimension_semantics = [], scalar_prefetch = 0 : i64, scratch_operands = 0 : i64, tpu.core_type = #tpu.core_type<tc>} {
    %c0 = arith.constant 0 : index
    %c0_0 = arith.constant 0 : index
    %0 = vector.load %arg0[%c0, %c0_0] : memref<16x1xi32, #tpu.memory_space<vmem>>, vector<16x1xi32>
    %c0_1 = arith.constant 0 : index
    %c0_2 = arith.constant 0 : index
    %1 = vector.load %arg1[%c0_1, %c0_2] : memref<16x1xi32, #tpu.memory_space<vmem>>, vector<16x1xi32>
    %2 = tpu.iota {dimensions = array<i32: 1>} : vector<16x128xi32>
    %3 = vector.broadcast %0 : vector<16x1xi32> to vector<16x128xi32>
    %4 = arith.cmpi eq, %2, %3 : vector<16x128xi32>
    %5 = arith.extui %4 : vector<16x128xi1> to vector<16x128xi32>
    %6 = arith.sitofp %5 : vector<16x128xi32> to vector<16x128xf32>
    %7 = tpu.iota {dimensions = array<i32: 0>} : vector<16x16xi32>
    %8 = tpu.iota {dimensions = array<i32: 1>} : vector<16x16xi32>
    %c7_i32 = arith.constant 7 : i32
    %9 = vector.broadcast %c7_i32 : i32 to vector<16x16xi32>
    %10 = arith.andi %7, %9 : vector<16x16xi32>
    %c8_i32 = arith.constant 8 : i32
    %11 = vector.broadcast %c8_i32 : i32 to vector<16x16xi32>
    %12 = arith.addi %10, %11 : vector<16x16xi32>
    %13 = vector.broadcast %1 : vector<16x1xi32> to vector<16x16xi32>
    %14 = arith.cmpi eq, %8, %13 : vector<16x16xi32>
    %15 = arith.cmpi eq, %8, %12 : vector<16x16xi32>
    %16 = arith.ori %14, %15 : vector<16x16xi1>
    %17 = arith.extui %16 : vector<16x16xi1> to vector<16x16xi32>
    %18 = arith.sitofp %17 : vector<16x16xi32> to vector<16x16xf32>
    %c0_3 = arith.constant 0 : index
    %c0_4 = arith.constant 0 : index
    %19 = vector.load %arg2[%c0_3, %c0_4] : memref<128x32xf32, #tpu.memory_space<vmem>>, vector<128x32xf32>
    %cst = arith.constant dense<0.000000e+00> : vector<16x32xf32>
    %20 = tpu.matmul %6, %19, %cst {dimension_numbers = #tpu.dot_dimension_numbers<[1], [0], [0], [1], [0, 0, 1, 1], [], []>} : vector<16x128xf32>, vector<128x32xf32>, vector<16x32xf32> -> vector<16x32xf32>
    %c0_5 = arith.constant 0 : index
    %c0_6 = arith.constant 0 : index
    %21 = vector.load %arg3[%c0_5, %c0_6] : memref<16x32xf32, #tpu.memory_space<vmem>>, vector<16x32xf32>
    %cst_7 = arith.constant dense<0.000000e+00> : vector<16x32xf32>
    %22 = tpu.matmul %18, %21, %cst_7 {dimension_numbers = #tpu.dot_dimension_numbers<[1], [0], [0], [1], [0, 0, 1, 1], [], []>} : vector<16x16xf32>, vector<16x32xf32>, vector<16x32xf32> -> vector<16x32xf32>
    %23 = arith.addf %20, %22 : vector<16x32xf32>
    %24 = arith.truncf %23 : vector<16x32xf32> to vector<16x32xbf16>
    %c0_8 = arith.constant 0 : index
    %c0_9 = arith.constant 0 : index
    %25 = vector.load %arg4[%c0_8, %c0_9] : memref<32x256xbf16, #tpu.memory_space<vmem>>, vector<32x256xbf16>
    %cst_10 = arith.constant dense<0.000000e+00> : vector<16x256xf32>
    %26 = tpu.matmul %24, %25, %cst_10 {dimension_numbers = #tpu.dot_dimension_numbers<[1], [0], [0], [1], [0, 0, 1, 1], [], []>} : vector<16x32xbf16>, vector<32x256xbf16>, vector<16x256xf32> -> vector<16x256xf32>
    %c0_11 = arith.constant 0 : index
    %c0_12 = arith.constant 0 : index
    %27 = vector.load %arg5[%c0_11, %c0_12] : memref<1x256xf32, #tpu.memory_space<vmem>>, vector<1x256xf32>
    %28 = vector.broadcast %27 : vector<1x256xf32> to vector<16x256xf32>
    %29 = arith.addf %26, %28 : vector<16x256xf32>
    %30 = vector.extract_strided_slice %29 {offsets = [0, 0], sizes = [16, 128], strides = [1, 1]} : vector<16x256xf32> to vector<16x128xf32>
    %cst_13 = arith.constant dense<0xFF800000> : vector<16xf32>
    %31 = vector.multi_reduction <maximumf>, %30, %cst_13 [1] : vector<16x128xf32> to vector<16xf32>
    %32 = vector.shape_cast %31 : vector<16xf32> to vector<16x1xf32>
    %33 = vector.broadcast %32 : vector<16x1xf32> to vector<16x128xf32>
    %34 = arith.subf %30, %33 : vector<16x128xf32>
    %35 = math.exp %34 : vector<16x128xf32>
    %cst_14 = arith.constant dense<0.000000e+00> : vector<16xf32>
    %36 = vector.multi_reduction <add>, %35, %cst_14 [1] : vector<16x128xf32> to vector<16xf32>
    %37 = vector.shape_cast %36 : vector<16xf32> to vector<16x1xf32>
    %38 = math.log %37 : vector<16x1xf32>
    %39 = vector.broadcast %38 : vector<16x1xf32> to vector<16x128xf32>
    %40 = arith.subf %34, %39 : vector<16x128xf32>
    %c0_15 = arith.constant 0 : index
    %c0_16 = arith.constant 0 : index
    %41 = vector.load %arg6[%c0_15, %c0_16] : memref<16x128xf32, #tpu.memory_space<vmem>>, vector<16x128xf32>
    tpu.vector_store %arg6[%c0_15, %c0_16], %40 {strides = array<i32>} : memref<16x128xf32, #tpu.memory_space<vmem>>, vector<16x128xf32>,
    %42 = vector.extract_strided_slice %29 {offsets = [0, 128], sizes = [16, 128], strides = [1, 1]} : vector<16x256xf32> to vector<16x128xf32>
    %cst_17 = arith.constant dense<0xFF800000> : vector<16xf32>
    %43 = vector.multi_reduction <maximumf>, %42, %cst_17 [1] : vector<16x128xf32> to vector<16xf32>
    %44 = vector.shape_cast %43 : vector<16xf32> to vector<16x1xf32>
    %45 = vector.broadcast %44 : vector<16x1xf32> to vector<16x128xf32>
    %46 = arith.subf %42, %45 : vector<16x128xf32>
    %47 = math.exp %46 : vector<16x128xf32>
    %cst_18 = arith.constant dense<0.000000e+00> : vector<16xf32>
    %48 = vector.multi_reduction <add>, %47, %cst_18 [1] : vector<16x128xf32> to vector<16xf32>
    %49 = vector.shape_cast %48 : vector<16xf32> to vector<16x1xf32>
    %50 = math.log %49 : vector<16x1xf32>
    %51 = vector.broadcast %50 : vector<16x1xf32> to vector<16x128xf32>
    %52 = arith.subf %46, %51 : vector<16x128xf32>
    %53 = vector.extract_strided_slice %52 {offsets = [0, 0], sizes = [1, 128], strides = [1, 1]} : vector<16x128xf32> to vector<1x128xf32>
    %c0_19 = arith.constant 0 : index
    %c0_20 = arith.constant 0 : index
    %54 = vector.load %arg7[%c0_19, %c0_20] : memref<2x128xf32, #tpu.memory_space<vmem>>, vector<1x128xf32>
    tpu.vector_store %arg7[%c0_19, %c0_20], %53 {strides = array<i32>} : memref<2x128xf32, #tpu.memory_space<vmem>>, vector<1x128xf32>,
    %55 = vector.extract_strided_slice %52 {offsets = [8, 0], sizes = [1, 128], strides = [1, 1]} : vector<16x128xf32> to vector<1x128xf32>
    %c1 = arith.constant 1 : index
    %c0_21 = arith.constant 0 : index
    %56 = vector.load %arg7[%c1, %c0_21] : memref<2x128xf32, #tpu.memory_space<vmem>>, vector<1x128xf32>
    tpu.vector_store %arg7[%c1, %c0_21], %55 {strides = array<i32>} : memref<2x128xf32, #tpu.memory_space<vmem>>, vector<1x128xf32>,
    return
  }
}

</mosaic_0001>

<llo_original>
// kernel: bert_lm_forward.1
$region0: #{bert_lm_forward.1}
  #allocation0 [shape = 'u32[]', space=smem, size = 0x4, offset = 0x4, fixed_abs, tag = 'smem constant byte address 0x4 - core index']
  #allocation1 [shape = 'u32[72,128]{1,0:T(1,128)}', space=vmem, size = 0x9000, scoped, tag = 'internal scratch']
  %s0 = inlined_call_operand.vmem [shape: s32[16,1], index: 0, kind: input, shape index: {}]
  %s1 = inlined_call_operand.vmem [shape: s32[16,1], index: 1, kind: input, shape index: {}]
  %s2 = inlined_call_operand.vmem [shape: f32[128,32], index: 2, kind: input, shape index: {}]
  %s3 = inlined_call_operand.vmem [shape: f32[16,32], index: 3, kind: input, shape index: {}]
  %s4 = inlined_call_operand.vmem [shape: bf16[32,256], index: 4, kind: input, shape index: {}]
  %s5 = inlined_call_operand.vmem [shape: f32[1,256], index: 5, kind: input, shape index: {}]
  %s6 = inlined_call_operand.hbm [shape: f32[16,128], index: 6, kind: output, shape index: {0}]
  %s7 = inlined_call_operand.hbm [shape: f32[2,128], index: 7, kind: output, shape index: {1}]
  %8 = xla_tuple %s6, %s7
  %s9 = sld [smem:[#allocation0]]
  $region42: #{bert_lm_forward.1} parent=0
    _
  %s11 = ssub.s32 1, %s9
  %s12 = scalar_select 0, %s11, %s9
  $region1: #{bert_lm_forward.1} parent=0
    #allocation2 [shape = 'u8[8192]{0}', space=vmem, size = 0x2000, scoped, tag = 'output window, operand 0, single buffered']
    #allocation3 [shape = 's32[1]{0}', space=sflag, size = 0x4, scoped, tag = 'scoped memory for bert_lm_forward.1']
    #allocation4 [shape = 'u8[1024]{0}', space=vmem, size = 0x400, scoped, tag = 'output window, operand 1, single buffered']
    #allocation5 [shape = 's32[1]{0}', space=sflag, size = 0x4, scoped, tag = 'scoped memory for bert_lm_forward.1']
    %13 = vsyncpa [#allocation3], 0
    %14 = vsyncpa [#allocation5], 0
    // Predicated region
    $region2: #{bert_lm_forward.1} parent=1 // pred_check
      _
    $region3: #{bert_lm_forward.1} parent=1 // pred_check_branch
      %16 = sbr.rel (0) target = $region5
    $region4: #{bert_lm_forward.1} parent=1 // pred_region
      _
    $region5: #{bert_lm_forward.1} parent=1 // pred_fallthru
      _
    // Predicated region
    $region6: #{bert_lm_forward.1} parent=1 // pred_check
      _
    $region7: #{bert_lm_forward.1} parent=1 // pred_check_branch
      %18 = sbr.rel (0) target = $region9
    $region8: #{bert_lm_forward.1} parent=1 // pred_region
      _
    $region9: #{bert_lm_forward.1} parent=1 // pred_fallthru
      _
    // Predicated region
    $region10: #{bert_lm_forward.1} parent=1 // pred_check
      _
    $region11: #{bert_lm_forward.1} parent=1 // pred_check_branch
      %20 = sbr.rel (0) target = $region13
    $region12: #{bert_lm_forward.1} parent=1 // pred_region
      _
    $region13: #{bert_lm_forward.1} parent=1 // pred_fallthru
      _
    // Predicated region
    $region14: #{bert_lm_forward.1} parent=1 // pred_check
      _
    $region15: #{bert_lm_forward.1} parent=1 // pred_check_branch
      %22 = sbr.rel (0) target = $region17
    $region16: #{bert_lm_forward.1} parent=1 // pred_region
      _
    $region17: #{bert_lm_forward.1} parent=1 // pred_fallthru
      _
    // Predicated region
    $region18: #{bert_lm_forward.1} parent=1 // pred_check
      _
    $region19: #{bert_lm_forward.1} parent=1 // pred_check_branch
      %24 = sbr.rel (0) target = $region21
    $region20: #{bert_lm_forward.1} parent=1 // pred_region
      _
    $region21: #{bert_lm_forward.1} parent=1 // pred_fallthru
      _
    // Predicated region
    $region22: #{bert_lm_forward.1} parent=1 // pred_check
      _
    $region23: #{bert_lm_forward.1} parent=1 // pred_check_branch
      %26 = sbr.rel (0) target = $region25
    $region24: #{bert_lm_forward.1} parent=1 // pred_region
      _
    $region25: #{bert_lm_forward.1} parent=1 // pred_fallthru
      _
    %v28 = vld [vmem:[%s0] sm:$0xff]
    %v29 = vld [vmem:[%s0 + $0x8] sm:$0xff]
    %v30 = vld [vmem:[%s1] sm:$0xff]
    %v31 = vld [vmem:[%s1 + $0x8] sm:$0xff]
    %v32 = vlaneseq
    %v33 = vand.u32 %v32, 127
    %34 = vset.pattern.permute.xlu0 0
    %35 = vperm.xlu0 %34, %v28
    %v36 = vpop.permute.xlu0 %35
    %37 = vset.pattern.permute.xlu0 0
    %38 = vperm.xlu0 %37, %v29
    %v39 = vpop.permute.xlu0 %38
    %vm40 = vcmp.eq.s32.totalorder %v33, %v36
    %vm41 = vcmp.eq.s32.totalorder %v33, %v39
    %v42 = vsel %vm40, 1, 0
    %v43 = vsel %vm41, 1, 0
    %v44 = vcvt.s32.f32 %v42
    %v45 = vcvt.s32.f32 %v43
    %v46 = vlaneseq
    %v47 = vshrl.u32 %v46, 7
    %v48 = vadd.s32 %v47, 8
    %v49 = vand.u32 %v47, 7
    %v50 = vand.u32 %v48, 7
    %v51 = vadd.s32 %v49, 8
    %v52 = vadd.s32 %v50, 8
    %53 = vset.pattern.permute.xlu0 0
    %54 = vperm.xlu0 %53, %v30
    %v55 = vpop.permute.xlu0 %54
    %56 = vset.pattern.permute.xlu0 0
    %57 = vperm.xlu0 %56, %v31
    %v58 = vpop.permute.xlu0 %57
    %vm59 = vcmp.eq.s32.totalorder %v33, %v55
    %vm60 = vcmp.eq.s32.totalorder %v33, %v58
    %vm61 = vcmp.eq.s32.totalorder %v33, %v51
    %vm62 = vcmp.eq.s32.totalorder %v33, %v52
    %vm63 = vmor %vm59, %vm61
    %vm64 = vmor %vm60, %vm62
    %v65 = vsel %vm63, 1, 0
    %v66 = vsel %vm64, 1, 0
    %v67 = vcvt.s32.f32 %v65
    %v68 = vcvt.s32.f32 %v66
    %v69 = vld [vmem:[%s2] sm:$0xff]
    %v70 = vld [vmem:[%s2 + $0x8] sm:$0xff]
    %v71 = vld [vmem:[%s2 + $0x10] sm:$0xff]
    %v72 = vld [vmem:[%s2 + $0x18] sm:$0xff]
    %v73 = vld [vmem:[%s2 + $0x20] sm:$0xff]
    %v74 = vld [vmem:[%s2 + $0x28] sm:$0xff]
    %v75 = vld [vmem:[%s2 + $0x30] sm:$0xff]
    %v76 = vld [vmem:[%s2 + $0x38] sm:$0xff]
    %v77 = vld [vmem:[%s2 + $0x40] sm:$0xff]
    %v78 = vld [vmem:[%s2 + $0x48] sm:$0xff]
    %v79 = vld [vmem:[%s2 + $0x50] sm:$0xff]
    %v80 = vld [vmem:[%s2 + $0x58] sm:$0xff]
    %v81 = vld [vmem:[%s2 + $0x60] sm:$0xff]
    %v82 = vld [vmem:[%s2 + $0x68] sm:$0xff]
    %v83 = vld [vmem:[%s2 + $0x70] sm:$0xff]
    %v84 = vld [vmem:[%s2 + $0x78] sm:$0xff]
    %v85 = vld [vmem:[%s3] sm:$0xff]
    %v86 = vld [vmem:[%s3 + $0x8] sm:$0xff]
    %vm87 = vcmask 130048
    %v89 = vsel %vm87, %v67, 0
    %v92 = vsel %vm87, %v68, 0
    %94 = vmatpush.msra.mxu0 0.0
    %95 = vmatpush.msra.mxu0 0.0
    %96 = vmatpush.msra.mxu0 0.0
    %97 = vmatpush.msra.mxu0 0.0
    %98 = vmatpush.msra.mxu0 0.0
    %99 = vmatpush.msra.mxu0 0.0
    %100 = vmatpush.msra.mxu0 0.0
    %101 = vmatpush.msra.mxu0 0.0
    %102 = vmatpush.msra.mxu0 0.0
    %103 = vmatpush.msra.mxu0 0.0
    %104 = vmatpush.msra.mxu0 0.0
    %105 = vmatpush.msra.mxu0 0.0
    %106 = vmatpush.msra.mxu0 0.0
    %107 = vmatpush.msra.mxu0 0.0
    %108 = vmatpush.msra.mxu0 %v86
    %109 = vmatpush.msra.mxu0 %v85
    %110 = vmatmul.f32.gmra.mxu0 %v89
    %v111 = vpop.f32.mrf.mxu0
    %v112 = vadd.f32 0.0, %v111
    %113 = vmatmul.f32.gmra.mxu0 %v92
    %v114 = vpop.f32.mrf.mxu0
    %v115 = vadd.f32 0.0, %v114
    %116 = vdwg.mxu0
    %117 = vmatpush.msra.mxu0 %v84
    %118 = vmatpush.msra.mxu0 %v83
    %119 = vmatpush.msra.mxu0 %v82
    %120 = vmatpush.msra.mxu0 %v81
    %121 = vmatpush.msra.mxu0 %v80
    %122 = vmatpush.msra.mxu0 %v79
    %123 = vmatpush.msra.mxu0 %v78
    %124 = vmatpush.msra.mxu0 %v77
    %125 = vmatpush.msra.mxu0 %v76
    %126 = vmatpush.msra.mxu0 %v75
    %127 = vmatpush.msra.mxu0 %v74
    %128 = vmatpush.msra.mxu0 %v73
    %129 = vmatpush.msra.mxu0 %v72
    %130 = vmatpush.msra.mxu0 %v71
    %131 = vmatpush.msra.mxu0 %v70
    %132 = vmatpush.msra.mxu0 %v69
    %133 = vmatmul.f32.gmra.mxu0 %v44
    %v134 = vpop.f32.mrf.mxu0
    %v135 = vadd.f32 %v112, %v134
    %136 = vmatmul.f32.gmra.mxu0 %v45
    %v137 = vpop.f32.mrf.mxu0
    %v138 = vadd.f32 %v115, %v137
    %139 = vdwg.mxu0
    %v140 = vpack.c.bf16 %v138, %v135
    %v141 = vld [vmem:[%s4] sm:$0xff]
    %v142 = vld [vmem:[%s4 + $0x8] sm:$0xff]
    %v143 = vld [vmem:[%s4 + $0x10] sm:$0xff]
    %v144 = vld [vmem:[%s4 + $0x18] sm:$0xff]
    %v145 = vld [vmem:[%s5] sm:$0x3]
    %v147 = vperm.slane %v145, 0
    %v148 = vperm.slane %v145, 1
    %v155 = vunpack.c.l.b16 %v141
    %v156 = vunpack.c.h.b16 %v141
    %v157 = vunpack.c.l.b16 %v142
    %v158 = vunpack.c.h.b16 %v142
    %v159 = vunpack.c.l.b16 %v143
    %v160 = vunpack.c.h.b16 %v143
    %v161 = vunpack.c.l.b16 %v144
    %v162 = vunpack.c.h.b16 %v144
    %v163 = vpack.c.b16 %v157, %v155
    %v164 = vpack.c.b16 %v158, %v156
    %v165 = vpack.c.b16 %v161, %v159
    %v166 = vpack.c.b16 %v162, %v160
    %vm171 = vcmask 261120
    %v173 = vsel %vm171, %v140, 0
    %175 = vmatpush.bf16.msra.mxu0 0
    %176 = vmatpush.bf16.msra.mxu0 0
    %177 = vmatpush.bf16.msra.mxu0 0
    %178 = vmatpush.bf16.msra.mxu0 0
    %179 = vmatpush.bf16.msra.mxu0 0
    %180 = vmatpush.bf16.msra.mxu0 0
    %181 = vmatpush.bf16.msra.mxu0 %v165
    %182 = vmatpush.bf16.msra.mxu0 %v163
    %183 = vmatmul.bf16.gmra.mxu0 %v173
    %v184 = vpop.f32.mrf.mxu0
    %v185 = vadd.f32 %v147, %v184
    %v186 = vpop.f32.mrf.mxu0
    %v187 = vadd.f32 %v147, %v186
    %188 = vdwg.mxu0
    %189 = vmatpush.bf16.msra.mxu0 0
    %190 = vmatpush.bf16.msra.mxu0 0
    %191 = vmatpush.bf16.msra.mxu0 0
    %192 = vmatpush.bf16.msra.mxu0 0
    %193 = vmatpush.bf16.msra.mxu0 0
    %194 = vmatpush.bf16.msra.mxu0 0
    %195 = vmatpush.bf16.msra.mxu0 %v166
    %196 = vmatpush.bf16.msra.mxu0 %v164
    %197 = vmatmul.bf16.gmra.mxu0 %v173
    %v198 = vpop.f32.mrf.mxu0
    %v199 = vadd.f32 %v148, %v198
    %v200 = vpop.f32.mrf.mxu0
    %v201 = vadd.f32 %v148, %v200
    %202 = vdwg.mxu0
    %203 = vmax.xlane.f32.xlu0 %v185
    %v204 = vpop.xlane.xlu0 %203
    %205 = vmax.xlane.f32.xlu0 %v187
    %v206 = vpop.xlane.xlu0 %205
    %v207 = vsub.f32 %v185, %v204
    %v208 = vsub.f32 %v187, %v206
    %v209 = vmul.f32 %v207, 1.442695
    %v210 = vpow.pop %v209
    %v211 = vmul.f32 %v208, 1.442695
    %v212 = vpow.pop %v211
    %213 = vadd.xlane.f32.xlu0 %v210
    %v214 = vpop.xlane.xlu0 %213
    %215 = vadd.xlane.f32.xlu0 %v212
    %v216 = vpop.xlane.xlu0 %215
    %v217 = vlog2.pop %v214
    %v218 = vmul.f32 %v217, 0.6931472
    %v219 = vlog2.pop %v216
    %v220 = vmul.f32 %v219, 0.6931472
    %v221 = vsub.f32 %v207, %v218
    %v222 = vsub.f32 %v208, %v220
    %223 = vst [vmem:[#allocation2] sm:$0xff] %v221
    %224 = vst [vmem:[#allocation2 + $0x8] sm:$0xff] %v222
    %225 = vmax.xlane.f32.xlu0 %v199
    %v226 = vpop.xlane.xlu0 %225
    %227 = vmax.xlane.f32.xlu0 %v201
    %v228 = vpop.xlane.xlu0 %227
    %v229 = vsub.f32 %v199, %v226
    %v230 = vsub.f32 %v201, %v228
    %v231 = vmul.f32 %v229, 1.442695
    %v232 = vpow.pop %v231
    %v233 = vmul.f32 %v230, 1.442695
    %v234 = vpow.pop %v233
    %235 = vadd.xlane.f32.xlu0 %v232
    %v236 = vpop.xlane.xlu0 %235
    %237 = vadd.xlane.f32.xlu0 %v234
    %v238 = vpop.xlane.xlu0 %237
    %v239 = vlog2.pop %v236
    %v240 = vmul.f32 %v239, 0.6931472
    %v241 = vlog2.pop %v238
    %v242 = vmul.f32 %v241, 0.6931472
    %v243 = vsub.f32 %v229, %v240
    %v244 = vsub.f32 %v230, %v242
    %245 = vst [vmem:[#allocation4] sm:$0x1] %v243
    %246 = vst [vmem:[#allocation4 + $0x1] sm:$0x1] %v244
    // Predicated region
    $region26: #{bert_lm_forward.1} parent=1 // pred_check
      _
    $region27: #{bert_lm_forward.1} parent=1 // pred_check_branch
      %248 = sbr.rel (0) target = $region29
    $region28: #{bert_lm_forward.1} parent=1 // pred_region
      %250 = vsyncadd [#allocation3], 0
      %s251 = sshll.u32 [#allocation2], 4
      %s252 = int_to_ptr.vmem [resolvable:$true] %s251
      %s253 = sshll.u32 %s6, 4
      %s254 = int_to_ptr.hbm [resolvable:$true] %s253
      %259 = dma.vmem_to_hbm [thread:$0]  %s252, 256, %s254, [#allocation3], 128, 128, 8
    $region29: #{bert_lm_forward.1} parent=1 // pred_fallthru
      _
    // Predicated region
    $region30: #{bert_lm_forward.1} parent=1 // pred_check
      _
    $region31: #{bert_lm_forward.1} parent=1 // pred_check_branch
      %261 = sbr.rel (0) target = $region33
    $region32: #{bert_lm_forward.1} parent=1 // pred_region
      %263 = vsyncadd [#allocation5], 0
      %s265 = sshll.u32 [#allocation4], 4
      %s266 = int_to_ptr.vmem [resolvable:$true] %s265
      %s267 = sshll.u32 %s7, 4
      %s268 = int_to_ptr.hbm [resolvable:$true] %s267
      %270 = dma.vmem_to_hbm [thread:$0]  %s266, 32, %s268, [#allocation5]
    $region33: #{bert_lm_forward.1} parent=1 // pred_fallthru
      _
    // Predicated region
    $region34: #{bert_lm_forward.1} parent=1 // pred_check
      _
    $region35: #{bert_lm_forward.1} parent=1 // pred_check_branch
      %272 = sbr.rel (0) target = $region37
    $region36: #{bert_lm_forward.1} parent=1 // pred_region
      %274 = dma.done [#allocation3], 256
    $region37: #{bert_lm_forward.1} parent=1 // pred_fallthru
      _
    // Predicated region
    $region38: #{bert_lm_forward.1} parent=1 // pred_check
      _
    $region39: #{bert_lm_forward.1} parent=1 // pred_check_branch
      %276 = sbr.rel (0) target = $region41
    $region40: #{bert_lm_forward.1} parent=1 // pred_region
      %278 = dma.done [#allocation5], 32
    $region41: #{bert_lm_forward.1} parent=1 // pred_fallthru
      _
    %279 = vsyncpa [#allocation3], 1
    %280 = vsyncpa [#allocation5], 1

</llo_original>
